<compile_context>
chip_gen: v5e
topology: v5e:2x2
jax: 0.10.0
libtpu: 0.0.40
codegen_flags: <defaults>
</compile_context>

<pallas_src>
import jax
import jax.numpy as jnp
from jax import lax
from jax.experimental import pallas as pl
from jax.experimental.pallas import tpu as pltpu


def _synth_kernel(attn_ref, w_ref, b_ref, x_ref, out_ref):
    # attn_ref: (tq, L)    f32  query-tile rows of the shared attention matrix
    # w_ref:    (Dp, D)    f32  Linear weight, PyTorch (out, in) layout, out-dim padded
    # b_ref:    (1, Dp)    f32  Linear bias (padded)
    # x_ref:    (B*L, D)   f32  whole input, rows ordered (b, l)  [wrapper metadata reshape]
    # out_ref:  (tq, B*Dp) f32  lane-dense output slab, columns ordered (b, d)
    tq, L = attn_ref.shape
    Dp = w_ref.shape[0]
    BL, D = x_ref.shape
    B = BL // L

    # Cast to bf16 inside the kernel (VPU work hidden under the MXU); HBM reads stay f32.
    xb = x_ref[...].astype(jnp.bfloat16)
    wb = w_ref[...].astype(jnp.bfloat16)

    # ---- value = x @ W^T + b as ONE (B*L, D) x (D, Dp) MXU matmul, f32 accumulation.
    # NOTE: value is recomputed per query tile; when L >> D the attention matmul
    # dominates, so this keeps the grid axis fully "parallel".
    # TODO(synk): hoist the Linear into a one-shot prologue (extra "arbitrary" grid
    # step + VMEM scratch) if a production config makes the Linear dominant.
    value = lax.dot_general(
        xb, wb,
        dimension_numbers=(((1,), (1,)), ((), ())),   # contract D with W's "in" axis
        preferred_element_type=jnp.float32)
    value = (value + b_ref[...]).astype(jnp.bfloat16)              # (B*L, Dp), rows (b, l)

    # ---- fold batch into lanes: (B*L, Dp) -> (L, B*Dp), columns ordered (b, d).
    # Static contiguous row-block slices placed side by side along the lane axis.
    slab = jnp.concatenate(
        [value[b * L:(b + 1) * L, :] for b in range(B)], axis=1)   # (L, B*Dp)

    # ---- out_slab = attention_tile @ value_slab : one wide, lane-dense MXU matmul.
    attnb = attn_ref[...].astype(jnp.bfloat16)                     # (tq, L)
    out = jnp.dot(attnb, slab, preferred_element_type=jnp.float32)  # (tq, B*Dp)
    out_ref[...] = out.astype(out_ref.dtype)


def _vmem_caps():
    """(per-block budget, vmem_limit clamp) derived from the actual TPU generation."""
    try:
        cap = int(getattr(pltpu.get_tpu_info(), "vmem_capacity_bytes", 64 << 20))
    except Exception:
        cap = 64 << 20
    if cap >= (96 << 20):                 # v5e / v6e class parts (128 MiB VMEM)
        return 24 << 20, 100 << 20
    return 12 << 20, 44 << 20             # v7x class parts (64 MiB VMEM)


def _pick_query_tile(L, row_bytes, budget):
    """Largest valid query tile under budget; prefer >=2 grid steps for v7x dual-TC
    as long as tiles stay large enough (>=256 rows) to amortize per-step overhead."""
    cands = [t for t in range(8, L + 1, 8) if L % t == 0]
    if not cands:
        cands = [L]                                       # L < 8 or not a multiple of 8
    fitting = [t for t in cands if 2 * t * row_bytes <= budget] or [min(cands)]
    tq = max(fitting)
    multi = [t for t in fitting if L // t >= 2 and t >= 256]
    if L // tq < 2 and multi:
        tq = max(multi)
    return tq


@jax.jit
def synthesizer_random_forward(x, attention, w, b):
    """x: (B, L, D); attention: (1, L, L); w: (D, D) PyTorch (out, in); b: (D,).

    Returns (out, attention) with out in f32 (like the f32-parameter PyTorch module),
    attention returned unchanged."""
    B, L, D = x.shape

    # Pad the out-feature dim to reach a lane-dense (multiple-of-128) folded width
    # only when folding batch into lanes is not already enough — avoids needless
    # HBM write amplification when B*D is already lane-dense.
    Dp = D if (B * D) % 128 == 0 else ((D + 127) // 128) * 128
    W = B * Dp                                            # folded output width

    budget, limit_clamp = _vmem_caps()
    row_bytes = 4 * (L + W)                               # attn row + out row (f32)
    tq = _pick_query_tile(L, row_bytes, budget)
    nq = L // tq

    # Layout plumbing in the wrapper: metadata-only reshapes, tiny weight/bias pads.
    x2 = x.reshape(B * L, D)                              # rows ordered (b, l)
    attn2 = attention.reshape(L, L)
    w_pad = jnp.pad(w, ((0, Dp - D), (0, 0)))             # (Dp, D), PyTorch (out, in)
    b_pad = jnp.pad(b, (0, Dp - D)).reshape(1, Dp)

    def _inv_spec(shape):
        # Grid-invariant input: fetched once; skip the second pipeline buffer when
        # the grid actually has multiple steps.
        if nq > 1:
            return pl.BlockSpec(shape, lambda i: (0,) * len(shape),
                                pipeline_mode=pl.Buffered(1))
        return pl.BlockSpec(shape, lambda i: (0,) * len(shape))

    inv_bytes = 4 * (B * L * D + Dp * D + Dp)
    blk_bytes = 4 * tq * (L + W)
    vmem_limit = int(min(limit_clamp,
                         max(8 << 20, 2 * inv_bytes + 4 * blk_bytes + (4 << 20))))

    flops = nq * 2 * (B * L) * D * Dp + 2 * L * L * W
    bytes_accessed = 4 * (B * L * D + L * L + Dp * D + Dp + L * W)

    out_slab = pl.pallas_call(
        _synth_kernel,
        out_shape=jax.ShapeDtypeStruct((L, W), jnp.float32),
        grid_spec=pltpu.PrefetchScalarGridSpec(
            num_scalar_prefetch=0,
            grid=(nq,),
            in_specs=[
                pl.BlockSpec((tq, L), lambda i: (i, 0)),  # attention query tile
                _inv_spec((Dp, D)),                       # W (padded out-dim)
                _inv_spec((1, Dp)),                       # bias
                _inv_spec((B * L, D)),                    # x, rows (b, l)
            ],
            out_specs=pl.BlockSpec((tq, W), lambda i: (i, 0)),
        ),
        compiler_params=pltpu.CompilerParams(
            dimension_semantics=("parallel",),            # query tiles across v7x TCs
            vmem_limit_bytes=vmem_limit),
        cost_estimate=pl.CostEstimate(
            flops=flops, transcendentals=0, bytes_accessed=bytes_accessed),
    )(attn2, w_pad, b_pad, x2)

    # Un-fold the lane slab: (L, B*Dp) -> (B, L, D).  Fused slice+transpose under jit.
    out = out_slab.reshape(L, B, Dp)[:, :, :D].transpose(1, 0, 2)
    return out, attention


def _xavier_uniform(key, shape, fan_in, fan_out, dtype=jnp.float32):
    bound = (6.0 / (fan_in + fan_out)) ** 0.5
    return jax.random.uniform(key, shape, dtype, minval=-bound, maxval=bound)


def _reference(x, attention, w, b):
    value = jnp.einsum('bld,ed->ble', x, w) + b                 # Linear: x @ W^T + b
    out = jnp.einsum('qk,bkd->bqd', attention[0], value)        # (1,L,L) broadcast matmul
    return out


if __name__ == "__main__":
    B, L, D = 2, 8, 32           # batch, sentence_length, in_dims
    key = jax.random.PRNGKey(0)
    k_attn, k_w, k_b, k_x = jax.random.split(key, 4)

    # Deterministic parameter init (shapes mirror the nn.Module __init__).
    attention = _xavier_uniform(k_attn, (1, L, L), fan_in=L * L, fan_out=L)
    w = _xavier_uniform(k_w, (D, D), fan_in=D, fan_out=D)       # Linear weight (out, in)
    b = jax.random.uniform(k_b, (D,), jnp.float32,
                           minval=-1.0 / (D ** 0.5), maxval=1.0 / (D ** 0.5))
    x = jax.random.normal(k_x, (B, L, D), jnp.float32)

    out, attn_out = synthesizer_random_forward(x, attention, w, b)
    out = jax.block_until_ready(out)

    ref = _reference(x, attention, w, b)
    assert out.shape == (B, L, D)
    assert out.dtype == jnp.float32
    assert attn_out.shape == (1, L, L)
    # bf16 MXU inputs with f32 accumulation -> relaxed tolerance vs f32 reference.
    assert jnp.allclose(out, ref, atol=3e-2, rtol=3e-2), "mismatch vs reference"

    print("KERNEL_OK")
</pallas_src>

<mosaic_0001>
module attributes {stable_mosaic.version = 11 : i64} {
  func.func @_synth_kernel(%arg0: i32, %arg1: memref<8x8xf32, #tpu.memory_space<vmem>>, %arg2: memref<128x32xf32, #tpu.memory_space<vmem>>, %arg3: memref<1x128xf32, #tpu.memory_space<vmem>>, %arg4: memref<16x32xf32, #tpu.memory_space<vmem>>, %arg5: memref<8x256xf32, #tpu.memory_space<vmem>>) attributes {dimension_semantics = [#tpu.dimension_semantics<parallel>], iteration_bounds = array<i64: 1>, scalar_prefetch = 0 : i64, scratch_operands = 0 : i64, tpu.core_type = #tpu.core_type<tc>, window_params = [{transform_indices = @transform_0, window_bounds = array<i64: 8, 8>}, {pipeline_mode = #tpu.pipeline_mode<synchronous>, transform_indices = @transform_1, window_bounds = array<i64: 128, 32>}, {pipeline_mode = #tpu.pipeline_mode<synchronous>, transform_indices = @transform_2, window_bounds = array<i64: 1, 128>}, {pipeline_mode = #tpu.pipeline_mode<synchronous>, transform_indices = @transform_3, window_bounds = array<i64: 16, 32>}, {transform_indices = @transform_4, window_bounds = array<i64: 8, 256>}]} {
    %c0 = arith.constant 0 : index
    %c0_0 = arith.constant 0 : index
    %0 = vector.load %arg4[%c0, %c0_0] : memref<16x32xf32, #tpu.memory_space<vmem>>, vector<16x32xf32>
    %1 = arith.truncf %0 : vector<16x32xf32> to vector<16x32xbf16>
    %c0_1 = arith.constant 0 : index
    %c0_2 = arith.constant 0 : index
    %2 = vector.load %arg2[%c0_1, %c0_2] : memref<128x32xf32, #tpu.memory_space<vmem>>, vector<128x32xf32>
    %3 = arith.truncf %2 : vector<128x32xf32> to vector<128x32xbf16>
    %cst = arith.constant dense<0.000000e+00> : vector<16x128xf32>
    %4 = tpu.matmul %1, %3, %cst {dimension_numbers = #tpu.dot_dimension_numbers<[1], [1], [0], [0], [0, 0, 1, 0], [], []>} : vector<16x32xbf16>, vector<128x32xbf16>, vector<16x128xf32> -> vector<16x128xf32>
    %c0_3 = arith.constant 0 : index
    %c0_4 = arith.constant 0 : index
    %5 = vector.load %arg3[%c0_3, %c0_4] : memref<1x128xf32, #tpu.memory_space<vmem>>, vector<1x128xf32>
    %6 = vector.broadcast %5 : vector<1x128xf32> to vector<16x128xf32>
    %7 = arith.addf %4, %6 : vector<16x128xf32>
    %8 = arith.truncf %7 : vector<16x128xf32> to vector<16x128xbf16>
    %9 = vector.extract_strided_slice %8 {offsets = [0, 0], sizes = [8, 128], strides = [1, 1]} : vector<16x128xbf16> to vector<8x128xbf16>
    %10 = vector.extract_strided_slice %8 {offsets = [8, 0], sizes = [8, 128], strides = [1, 1]} : vector<16x128xbf16> to vector<8x128xbf16>
    %11 = tpu.concatenate %9, %10 in 1 : vector<8x128xbf16>, vector<8x128xbf16> -> vector<8x256xbf16>
    %c0_5 = arith.constant 0 : index
    %c0_6 = arith.constant 0 : index
    %12 = vector.load %arg1[%c0_5, %c0_6] : memref<8x8xf32, #tpu.memory_space<vmem>>, vector<8x8xf32>
    %13 = arith.truncf %12 : vector<8x8xf32> to vector<8x8xbf16>
    %cst_7 = arith.constant dense<0.000000e+00> : vector<8x256xf32>
    %14 = tpu.matmul %13, %11, %cst_7 {dimension_numbers = #tpu.dot_dimension_numbers<[1], [0], [0], [1], [0, 0, 1, 1], [], []>} : vector<8x8xbf16>, vector<8x256xbf16>, vector<8x256xf32> -> vector<8x256xf32>
    %c0_8 = arith.constant 0 : index
    %c0_9 = arith.constant 0 : index
    %15 = vector.load %arg5[%c0_8, %c0_9] : memref<8x256xf32, #tpu.memory_space<vmem>>, vector<8x256xf32>
    tpu.vector_store %arg5[%c0_8, %c0_9], %14 {strides = array<i32>} : memref<8x256xf32, #tpu.memory_space<vmem>>, vector<8x256xf32>,
    return
  }
  func.func @transform_0(%arg0: i32) -> (i32, i32) {
    %c0_i32 = arith.constant 0 : i32
    %c0_i32_0 = arith.constant 0 : i32
    return %arg0, %c0_i32 : i32, i32
  }
  func.func @transform_1(%arg0: i32) -> (i32, i32) {
    %c0_i32 = arith.constant 0 : i32
    %c0_i32_0 = arith.constant 0 : i32
    %c0_i32_1 = arith.constant 0 : i32
    return %c0_i32, %c0_i32_0 : i32, i32
  }
  func.func @transform_2(%arg0: i32) -> (i32, i32) {
    %c0_i32 = arith.constant 0 : i32
    %c0_i32_0 = arith.constant 0 : i32
    %c0_i32_1 = arith.constant 0 : i32
    return %c0_i32, %c0_i32_0 : i32, i32
  }
  func.func @transform_3(%arg0: i32) -> (i32, i32) {
    %c0_i32 = arith.constant 0 : i32
    %c0_i32_0 = arith.constant 0 : i32
    %c0_i32_1 = arith.constant 0 : i32
    return %c0_i32, %c0_i32_0 : i32, i32
  }
  func.func @transform_4(%arg0: i32) -> (i32, i32) {
    %c0_i32 = arith.constant 0 : i32
    %c0_i32_0 = arith.constant 0 : i32
    return %arg0, %c0_i32 : i32, i32
  }
}

</mosaic_0001>

<llo_original>
// kernel: synthesizer_random_forward.1
$region0: #{synthesizer_random_forward.1}
  #allocation0 [shape = 'u32[]', space=smem, size = 0x4, offset = 0x4, fixed_abs, tag = 'smem constant byte address 0x4 - core index']
  #allocation1 [shape = 'u32[72,128]{1,0:T(1,128)}', space=vmem, size = 0x9000, scoped, tag = 'internal scratch']
  %s0 = inlined_call_operand.vmem [shape: f32[8,8], index: 0, kind: input, shape index: {}]
  %s1 = inlined_call_operand.vmem [shape: f32[128,32], index: 1, kind: input, shape index: {}]
  %s2 = inlined_call_operand.vmem [shape: f32[1,128], index: 2, kind: input, shape index: {}]
  %s3 = inlined_call_operand.vmem [shape: f32[16,32], index: 3, kind: input, shape index: {}]
  %s4 = inlined_call_operand.vmem [shape: f32[8,256], index: 4, kind: output, shape index: {}]
  %s5 = sld [smem:[#allocation0]]
  $region26: #{synthesizer_random_forward.1} parent=0
    _
  %s7 = ssub.s32 1, %s5
  %s8 = scalar_select 0, %s7, %s5
  // Predicated region
  $region2: #{synthesizer_random_forward.1} parent=0 // pred_check
    _
  $region3: #{synthesizer_random_forward.1} parent=0 // pred_check_branch
    %10 = sbr.rel (0) target = $region5
  $region4: #{synthesizer_random_forward.1} parent=0 // pred_region
    _
  $region5: #{synthesizer_random_forward.1} parent=0 // pred_fallthru
    _
  // Predicated region
  $region6: #{synthesizer_random_forward.1} parent=0 // pred_check
    _
  $region7: #{synthesizer_random_forward.1} parent=0 // pred_check_branch
    %12 = sbr.rel (0) target = $region9
  $region8: #{synthesizer_random_forward.1} parent=0 // pred_region
    _
  $region9: #{synthesizer_random_forward.1} parent=0 // pred_fallthru
    _
  // Predicated region
  $region10: #{synthesizer_random_forward.1} parent=0 // pred_check
    _
  $region11: #{synthesizer_random_forward.1} parent=0 // pred_check_branch
    %14 = sbr.rel (0) target = $region13
  $region12: #{synthesizer_random_forward.1} parent=0 // pred_region
    _
  $region13: #{synthesizer_random_forward.1} parent=0 // pred_fallthru
    _
  // Predicated region
  $region14: #{synthesizer_random_forward.1} parent=0 // pred_check
    _
  $region15: #{synthesizer_random_forward.1} parent=0 // pred_check_branch
    %16 = sbr.rel (0) target = $region17
  $region16: #{synthesizer_random_forward.1} parent=0 // pred_region
    _
  $region17: #{synthesizer_random_forward.1} parent=0 // pred_fallthru
    _
  %v18 = vld [vmem:[%s3] sm:$0xff]
  %v19 = vld [vmem:[%s3 + $0x8] sm:$0xff]
  %v20 = vpack.c.bf16 %v19, %v18
  %v21 = vld [vmem:[%s1] sm:$0xff]
  %v22 = vld [vmem:[%s1 + $0x8] sm:$0xff]
  %v23 = vld [vmem:[%s1 + $0x10] sm:$0xff]
  %v24 = vld [vmem:[%s1 + $0x18] sm:$0xff]
  %v25 = vld [vmem:[%s1 + $0x20] sm:$0xff]
  %v26 = vld [vmem:[%s1 + $0x28] sm:$0xff]
  %v27 = vld [vmem:[%s1 + $0x30] sm:$0xff]
  %v28 = vld [vmem:[%s1 + $0x38] sm:$0xff]
  %v29 = vld [vmem:[%s1 + $0x40] sm:$0xff]
  %v30 = vld [vmem:[%s1 + $0x48] sm:$0xff]
  %v31 = vld [vmem:[%s1 + $0x50] sm:$0xff]
  %v32 = vld [vmem:[%s1 + $0x58] sm:$0xff]
  %v33 = vld [vmem:[%s1 + $0x60] sm:$0xff]
  %v34 = vld [vmem:[%s1 + $0x68] sm:$0xff]
  %v35 = vld [vmem:[%s1 + $0x70] sm:$0xff]
  %v36 = vld [vmem:[%s1 + $0x78] sm:$0xff]
  %v37 = vpack.c.bf16 %v22, %v21
  %v38 = vpack.c.bf16 %v24, %v23
  %v39 = vpack.c.bf16 %v26, %v25
  %v40 = vpack.c.bf16 %v28, %v27
  %v41 = vpack.c.bf16 %v30, %v29
  %v42 = vpack.c.bf16 %v32, %v31
  %v43 = vpack.c.bf16 %v34, %v33
  %v44 = vpack.c.bf16 %v36, %v35
  %v45 = vld [vmem:[%s2] sm:$0x1]
  %v47 = vperm.slane %v45, 0
  %vm49 = vcmask 261120
  %v51 = vsel %vm49, %v20, 0
  %v54 = vsel %vm49, %v37, 0
  %v57 = vsel %vm49, %v38, 0
  %v60 = vsel %vm49, %v39, 0
  %v63 = vsel %vm49, %v40, 0
  %v66 = vsel %vm49, %v41, 0
  %v69 = vsel %vm49, %v42, 0
  %v72 = vsel %vm49, %v43, 0
  %v75 = vsel %vm49, %v44, 0
  %77 = vmatpush.bf16.xpose.msra.mxu0 %v75
  %78 = vmatpush.bf16.xpose.msra.mxu0 %v72
  %79 = vmatpush.bf16.xpose.msra.mxu0 %v69
  %80 = vmatpush.bf16.xpose.msra.mxu0 %v66
  %81 = vmatpush.bf16.xpose.msra.mxu0 %v63
  %82 = vmatpush.bf16.xpose.msra.mxu0 %v60
  %83 = vmatpush.bf16.xpose.msra.mxu0 %v57
  %84 = vmatpush.bf16.xpose.msra.mxu0 %v54
  %85 = vmatmul.bf16.gmra.mxu0 %v51
  %v86 = vpop.f32.mrf.mxu0
  %v87 = vadd.f32 %v47, %v86
  %v88 = vpop.f32.mrf.mxu0
  %v89 = vadd.f32 %v47, %v88
  %90 = vdwg.mxu0
  %v91 = vpack.c.bf16 %v87, %v87
  %v92 = vpack.c.bf16 %v89, %v89
  %v93 = vld [vmem:[%s0] sm:$0xff]
  %v94 = vpack.c.bf16 %v93, %v93
  %vm95 = vcmask 64512
  %v97 = vsel %vm95, %v94, 0
  %vm99 = vcmask 1043456
  %v101 = vsel %vm99, %v91, 0
  %v104 = vsel %vm99, %v92, 0
  %106 = vmatpush.bf16.msra.mxu0 0
  %107 = vmatpush.bf16.msra.mxu0 0
  %108 = vmatpush.bf16.msra.mxu0 0
  %109 = vmatpush.bf16.msra.mxu0 0
  %110 = vmatpush.bf16.msra.mxu0 0
  %111 = vmatpush.bf16.msra.mxu0 0
  %112 = vmatpush.bf16.msra.mxu0 0
  %113 = vmatpush.bf16.msra.mxu0 %v101
  %114 = vmatmul.bf16.gmra.mxu0 %v97
  %v115 = vpop.f32.mrf.mxu0
  %v116 = vadd.f32 0.0, %v115
  %v117 = vpop.f32.mrf.mxu0
  %118 = vdwg.mxu0
  %119 = vmatpush.bf16.msra.mxu0 0
  %120 = vmatpush.bf16.msra.mxu0 0
  %121 = vmatpush.bf16.msra.mxu0 0
  %122 = vmatpush.bf16.msra.mxu0 0
  %123 = vmatpush.bf16.msra.mxu0 0
  %124 = vmatpush.bf16.msra.mxu0 0
  %125 = vmatpush.bf16.msra.mxu0 0
  %126 = vmatpush.bf16.msra.mxu0 %v104
  %127 = vmatmul.bf16.gmra.mxu0 %v97
  %v128 = vpop.f32.mrf.mxu0
  %v129 = vadd.f32 0.0, %v128
  %v130 = vpop.f32.mrf.mxu0
  %131 = vdwg.mxu0
  %132 = vst [vmem:[%s4] sm:$0xff] %v116
  %133 = vst [vmem:[%s4 + $0x8] sm:$0xff] %v129
  // Predicated region
  $region18: #{synthesizer_random_forward.1} parent=0 // pred_check
    _
  $region19: #{synthesizer_random_forward.1} parent=0 // pred_check_branch
    %135 = sbr.rel (0) target = $region21
  $region20: #{synthesizer_random_forward.1} parent=0 // pred_region
    _
  $region21: #{synthesizer_random_forward.1} parent=0 // pred_fallthru
    _
  // Predicated region
  $region22: #{synthesizer_random_forward.1} parent=0 // pred_check
    _
  $region23: #{synthesizer_random_forward.1} parent=0 // pred_check_branch
    %137 = sbr.rel (0) target = $region25
  $region24: #{synthesizer_random_forward.1} parent=0 // pred_region
    _
  $region25: #{synthesizer_random_forward.1} parent=0 // pred_fallthru
    _

</llo_original>
